<compile_context>
chip_gen: v7x
topology: tpu7x:2x2x1
jax: 0.10.0
libtpu: 0.0.40
codegen_flags: <defaults>
</compile_context>

<pallas_src>
import functools

import jax
import jax.numpy as jnp
from jax import lax
from jax.experimental import pallas as pl
from jax.experimental.pallas import tpu as pltpu

LANE = 128
BLOCK_ROWS = 4096            # (4096,128) f32 = 2 MiB per input per buffer; 3 inputs x 2 bufs = 12 MiB
NCORES = 2                   # megacore split of the streaming reduction (v7x); harmless elsewhere
MIN_BLOCKS_PER_CORE = 4      # only split across cores if each core's pipeline stays deep enough
_STREAM_VMEM_LIMIT = 32 << 20  # explicit scoped-VMEM limit so 12 MiB tiles also pass on v5e


def _vmem_capacity_bytes():
    try:
        cap = int(pltpu.get_tpu_info().vmem_capacity_bytes)
        if cap > 0:
            return cap
    except Exception:
        pass
    return 64 << 20            # conservative default (v7x per-core VMEM)


_VMEM_CAP = _vmem_capacity_bytes()
# Resident-input budget for the grid-less direct path (v7x ~21 MiB of 64; v5e/v6e 40 of 128).
_DIRECT_BUDGET_BYTES = min(_VMEM_CAP // 3, 40 << 20)
_DIRECT_VMEM_LIMIT = min(_VMEM_CAP - (8 << 20), 100 << 20)


def _dense_2d(t):
    """Metadata-only reshape to a sublane/lane-dense 2-D layout (no HBM copy)."""
    n = int(t.size)
    flat = t.reshape(-1)
    if n % LANE == 0:
        return flat.reshape(n // LANE, LANE)          # fully lane-dense
    last = int(t.shape[-1]) if t.ndim >= 1 else 1
    if last >= 32 and n % last == 0:
        return flat.reshape(n // last, last)          # reasonably dense fallback
    return flat.reshape(1, n)                         # tiny / odd remainders only


def _vmem_bytes_2d(t):
    """Approximate (8,128)-tile-padded VMEM residency of a 2-D block in its native dtype."""
    rows, cols = t.shape
    prows = -(-rows // 8) * 8
    pcols = -(-cols // LANE) * LANE
    return prows * pcols * t.dtype.itemsize


def _direct_kernel(*refs):
    """Grid-less kernel: every (score, assign, gt) tensor resident in VMEM as a dense block."""
    out_ref = refs[-1]
    nt = (len(refs) - 1) // 3
    s_refs = refs[:nt]
    a_refs = refs[nt:2 * nt]
    g_refs = refs[2 * nt:3 * nt]

    vec = jnp.zeros((8, LANE), jnp.float32)    # vector partials: one cross-lane reduce at end
    scal = jnp.zeros((1, 1), jnp.float32)      # fallback for shapes that don't tile to (k,8,128)
    for s_ref, a_ref, g_ref in zip(s_refs, a_refs, g_refs):
        s = s_ref[...].astype(jnp.float32)
        d = a_ref[...].astype(jnp.float32) - g_ref[...].astype(jnp.float32)
        term = s * d + jnp.abs(d)
        rows, cols = term.shape
        if cols == LANE and rows % 8 == 0:
            # Layout-preserving reshape + axis-0 sum = pure vreg adds (no per-tensor XLU reduce).
            vec = vec + term.reshape(rows // 8, 8, LANE).sum(axis=0)
        else:
            scal = scal + jnp.sum(term)
    out_ref[...] = scal + jnp.sum(vec)          # raw sum; ReLU applied in the wrapper


def _stream_kernel(total_rows, needs_mask, s_ref, a_ref, g_ref, out_ref, acc_ref):
    """Streaming reduction over (BLOCK_ROWS, LANE) tiles with an (8,128) vector accumulator."""
    c = pl.program_id(0)
    i = pl.program_id(1)
    steps = pl.num_programs(1)

    @pl.when(i == 0)
    def _():
        acc_ref[...] = jnp.zeros_like(acc_ref)

    s = s_ref[...].astype(jnp.float32)
    d = a_ref[...].astype(jnp.float32) - g_ref[...].astype(jnp.float32)
    term = s * d + jnp.abs(d)

    if needs_mask:
        # Ragged last block: rows past the true end of the array hold unspecified padding.
        # jnp.where is a select, so any garbage (even NaN) in the padded region is dropped.
        valid = total_rows - (c * steps + i) * BLOCK_ROWS
        row_idx = lax.broadcasted_iota(jnp.int32, (BLOCK_ROWS, LANE), 0)
        term = jnp.where(row_idx < valid, term, 0.0)

    # Layout-preserving reshape + axis-0 sum: pure VPU vreg adds per step.
    acc_ref[...] += term.reshape(BLOCK_ROWS // 8, 8, LANE).sum(axis=0)

    @pl.when(i == steps - 1)
    def _():
        # Single cross-lane/sublane reduce, once per core per tensor.
        out_ref[...] = jnp.sum(acc_ref[...], keepdims=True)


def _direct_call(scores, assigns, gts):
    inputs = list(scores) + list(assigns) + list(gts)
    out = pl.pallas_call(
        _direct_kernel,
        out_shape=jax.ShapeDtypeStruct((1, 1), jnp.float32),
        compiler_params=pltpu.CompilerParams(vmem_limit_bytes=_DIRECT_VMEM_LIMIT),
    )(*inputs)
    return out[0, 0]


def _streaming_call(s2d, a2d, g2d):
    """Stream one (score, assign, gt) triple, already reshaped (metadata-only) to (rows, 128)."""
    rows = s2d.shape[0]
    blocks = pl.cdiv(rows, BLOCK_ROWS)
    if blocks % NCORES == 0 and blocks // NCORES >= MIN_BLOCKS_PER_CORE:
        ncores = NCORES
    else:
        ncores = 1
    steps = blocks // ncores
    needs_mask = (rows % BLOCK_ROWS) != 0

    in_map = lambda c, i: (c * steps + i, 0)
    in_spec = pl.BlockSpec((BLOCK_ROWS, LANE), in_map)
    kernel = functools.partial(_stream_kernel, rows, needs_mask)

    partials = pl.pallas_call(
        kernel,
        out_shape=jax.ShapeDtypeStruct((ncores, 1), jnp.float32),
        grid_spec=pltpu.PrefetchScalarGridSpec(
            num_scalar_prefetch=0,
            grid=(ncores, steps),
            in_specs=[in_spec, in_spec, in_spec],
            out_specs=pl.BlockSpec((1, 1), lambda c, i: (c, 0)),
            scratch_shapes=[pltpu.VMEM((8, LANE), jnp.float32)],
        ),
        compiler_params=pltpu.CompilerParams(
            dimension_semantics=("parallel", "arbitrary"),
            vmem_limit_bytes=_STREAM_VMEM_LIMIT),
    )(s2d, a2d, g2d)
    return jnp.sum(partials)


@jax.jit
def distance_loss(assign_det, assign_link, assign_new, assign_end,
                  gt_det, gt_link, gt_new, gt_end,
                  det_score, link_score, new_score, end_score):
    triples = [(det_score, assign_det, gt_det),
               (new_score, assign_new, gt_new),
               (end_score, assign_end, gt_end)]
    for i in range(len(link_score)):
        triples.append((link_score[i], assign_link[i], gt_link[i]))

    direct_s, direct_a, direct_g = [], [], []
    partials = []
    direct_used = 0
    for s, a, g in triples:
        n = int(s.size)
        if n == 0:
            continue
        s2, a2, g2 = _dense_2d(s), _dense_2d(a), _dense_2d(g)
        resident = _vmem_bytes_2d(s2) + _vmem_bytes_2d(a2) + _vmem_bytes_2d(g2)
        if direct_used + resident <= _DIRECT_BUDGET_BYTES:
            direct_used += resident
            direct_s.append(s2)
            direct_a.append(a2)
            direct_g.append(g2)
        elif n % LANE == 0:
            partials.append(_streaming_call(s2, a2, g2))
        else:
            # Rare fallback: a huge tensor whose size is not a multiple of 128 lanes.
            # Zero padding is exact (score*0 + |0| == 0) but costs one extra copy.
            pad = (-n) % LANE
            sp = jnp.pad(s.reshape(-1), (0, pad)).reshape(-1, LANE)
            ap = jnp.pad(a.reshape(-1), (0, pad)).reshape(-1, LANE)
            gp = jnp.pad(g.reshape(-1), (0, pad)).reshape(-1, LANE)
            partials.append(_streaming_call(sp, ap, gp))

    total = jnp.float32(0.0)
    if direct_s:
        total = total + _direct_call(direct_s, direct_a, direct_g)
    for p in partials:
        total = total + p
    # F.relu(total sum)
    return jnp.maximum(total, jnp.float32(0.0))


def _reference(assign_det, assign_link, assign_new, assign_end,
               gt_det, gt_link, gt_new, gt_end,
               det_score, link_score, new_score, end_score):
    total = jnp.sum(det_score * (assign_det - gt_det))
    total += jnp.sum(new_score * (assign_new - gt_new))
    total += jnp.sum(end_score * (assign_end - gt_end))
    total += jnp.sum(jnp.abs(assign_det - gt_det))
    total += jnp.sum(jnp.abs(assign_new - gt_new))
    total += jnp.sum(jnp.abs(assign_end - gt_end))
    for i in range(len(link_score)):
        total += jnp.sum(link_score[i] * (assign_link[i] - gt_link[i]))
        total += jnp.sum(jnp.abs(assign_link[i] - gt_link[i]))
    return jnp.maximum(total, 0.0)


def _make_inputs(key, det_shape, new_shape, end_shape, link_shapes):
    n_links = len(link_shapes)
    keys = iter(jax.random.split(key, 9 + 6 * n_links))

    def rnd(shape):
        return jax.random.normal(next(keys), shape, dtype=jnp.float32)

    assign_det, gt_det, det_score = rnd(det_shape), rnd(det_shape), rnd(det_shape)
    assign_new, gt_new, new_score = rnd(new_shape), rnd(new_shape), rnd(new_shape)
    assign_end, gt_end, end_score = rnd(end_shape), rnd(end_shape), rnd(end_shape)
    assign_link = [rnd(s) for s in link_shapes]
    gt_link = [rnd(s) for s in link_shapes]
    link_score = [rnd(s) for s in link_shapes]
    return (assign_det, assign_link, assign_new, assign_end,
            gt_det, gt_link, gt_new, gt_end,
            det_score, link_score, new_score, end_score)


if __name__ == "__main__":
    root = jax.random.PRNGKey(0)
    k_small, k_big = jax.random.split(root)

    # Small test: exercises the grid-less, copy-free direct path (dense 2-D layouts).
    args_small = _make_inputs(
        k_small,
        det_shape=(2, 8, 8), new_shape=(2, 8, 1), end_shape=(2, 1, 8),
        link_shapes=[(2, 8, 8), (2, 8, 8)])
    out_small = jax.block_until_ready(distance_loss(*args_small))
    ref_small = _reference(*args_small)
    assert jnp.allclose(out_small, ref_small, rtol=1e-5, atol=1e-5), (out_small, ref_small)

    # Larger test: exercises the per-tensor streaming path (no concat/pad), including a
    # ragged (masked) last block, the 2-core parallel split, and mixed direct+stream routing.
    args_big = _make_inputs(
        k_big,
        det_shape=(4, 1024, 1024),          # streams: 8 full (4096,128) blocks, 2 cores
        new_shape=(4, 1024, 1), end_shape=(4, 1, 1024),   # direct
        link_shapes=[(4, 960, 1024),        # streams: ragged last block -> in-kernel mask
                     (2, 64, 64)])          # direct
    out_big = jax.block_until_ready(distance_loss(*args_big))
    ref_big = _reference(*args_big)
    assert jnp.allclose(out_big, ref_big, rtol=2e-4, atol=1e-2), (out_big, ref_big)

    print("KERNEL_OK")
</pallas_src>

<mosaic_0001>
module attributes {stable_mosaic.version = 11 : i64} {
  func.func @_direct_kernel(%arg0: memref<1x128xf32, #tpu.memory_space<vmem>>, %arg1: memref<1x16xf32, #tpu.memory_space<vmem>>, %arg2: memref<1x16xf32, #tpu.memory_space<vmem>>, %arg3: memref<1x128xf32, #tpu.memory_space<vmem>>, %arg4: memref<1x128xf32, #tpu.memory_space<vmem>>, %arg5: memref<1x128xf32, #tpu.memory_space<vmem>>, %arg6: memref<1x16xf32, #tpu.memory_space<vmem>>, %arg7: memref<1x16xf32, #tpu.memory_space<vmem>>, %arg8: memref<1x128xf32, #tpu.memory_space<vmem>>, %arg9: memref<1x128xf32, #tpu.memory_space<vmem>>, %arg10: memref<1x128xf32, #tpu.memory_space<vmem>>, %arg11: memref<1x16xf32, #tpu.memory_space<vmem>>, %arg12: memref<1x16xf32, #tpu.memory_space<vmem>>, %arg13: memref<1x128xf32, #tpu.memory_space<vmem>>, %arg14: memref<1x128xf32, #tpu.memory_space<vmem>>, %arg15: memref<1x1xf32, #tpu.memory_space<vmem>>) attributes {dimension_semantics = [], scalar_prefetch = 0 : i64, scratch_operands = 0 : i64, tpu.core_type = #tpu.core_type<tc>} {
    %cst = arith.constant 0.000000e+00 : f32
    %0 = vector.broadcast %cst : f32 to vector<8x128xf32>
    %cst_0 = arith.constant 0.000000e+00 : f32
    %1 = vector.broadcast %cst_0 : f32 to vector<1x1xf32>
    %c0 = arith.constant 0 : index
    %c0_1 = arith.constant 0 : index
    %2 = vector.load %arg0[%c0, %c0_1] : memref<1x128xf32, #tpu.memory_space<vmem>>, vector<1x128xf32>
    %c0_2 = arith.constant 0 : index
    %c0_3 = arith.constant 0 : index
    %3 = vector.load %arg5[%c0_2, %c0_3] : memref<1x128xf32, #tpu.memory_space<vmem>>, vector<1x128xf32>
    %c0_4 = arith.constant 0 : index
    %c0_5 = arith.constant 0 : index
    %4 = vector.load %arg10[%c0_4, %c0_5] : memref<1x128xf32, #tpu.memory_space<vmem>>, vector<1x128xf32>
    %5 = arith.subf %3, %4 : vector<1x128xf32>
    %6 = arith.mulf %2, %5 : vector<1x128xf32>
    %7 = math.absf %5 : vector<1x128xf32>
    %8 = arith.addf %6, %7 : vector<1x128xf32>
    %9 = vector.shape_cast %8 : vector<1x128xf32> to vector<1x1x128xf32>
    %cst_6 = arith.constant dense<0.000000e+00> : vector<1xf32>
    %10 = vector.multi_reduction <add>, %9, %cst_6 [1, 2] : vector<1x1x128xf32> to vector<1xf32>
    %11 = vector.shape_cast %10 : vector<1xf32> to vector<1x1x1xf32>
    %12 = vector.extract %11[0, 0, 0] : f32 from vector<1x1x1xf32>
    %13 = vector.broadcast %12 : f32 to vector<1x1xf32>
    %14 = arith.addf %1, %13 : vector<1x1xf32>
    %c0_7 = arith.constant 0 : index
    %c0_8 = arith.constant 0 : index
    %15 = vector.load %arg1[%c0_7, %c0_8] : memref<1x16xf32, #tpu.memory_space<vmem>>, vector<1x16xf32>
    %c0_9 = arith.constant 0 : index
    %c0_10 = arith.constant 0 : index
    %16 = vector.load %arg6[%c0_9, %c0_10] : memref<1x16xf32, #tpu.memory_space<vmem>>, vector<1x16xf32>
    %c0_11 = arith.constant 0 : index
    %c0_12 = arith.constant 0 : index
    %17 = vector.load %arg11[%c0_11, %c0_12] : memref<1x16xf32, #tpu.memory_space<vmem>>, vector<1x16xf32>
    %18 = arith.subf %16, %17 : vector<1x16xf32>
    %19 = arith.mulf %15, %18 : vector<1x16xf32>
    %20 = math.absf %18 : vector<1x16xf32>
    %21 = arith.addf %19, %20 : vector<1x16xf32>
    %22 = vector.shape_cast %21 : vector<1x16xf32> to vector<1x1x16xf32>
    %cst_13 = arith.constant dense<0.000000e+00> : vector<1xf32>
    %23 = vector.multi_reduction <add>, %22, %cst_13 [1, 2] : vector<1x1x16xf32> to vector<1xf32>
    %24 = vector.shape_cast %23 : vector<1xf32> to vector<1x1x1xf32>
    %25 = vector.extract %24[0, 0, 0] : f32 from vector<1x1x1xf32>
    %26 = vector.broadcast %25 : f32 to vector<1x1xf32>
    %27 = arith.addf %14, %26 : vector<1x1xf32>
    %c0_14 = arith.constant 0 : index
    %c0_15 = arith.constant 0 : index
    %28 = vector.load %arg2[%c0_14, %c0_15] : memref<1x16xf32, #tpu.memory_space<vmem>>, vector<1x16xf32>
    %c0_16 = arith.constant 0 : index
    %c0_17 = arith.constant 0 : index
    %29 = vector.load %arg7[%c0_16, %c0_17] : memref<1x16xf32, #tpu.memory_space<vmem>>, vector<1x16xf32>
    %c0_18 = arith.constant 0 : index
    %c0_19 = arith.constant 0 : index
    %30 = vector.load %arg12[%c0_18, %c0_19] : memref<1x16xf32, #tpu.memory_space<vmem>>, vector<1x16xf32>
    %31 = arith.subf %29, %30 : vector<1x16xf32>
    %32 = arith.mulf %28, %31 : vector<1x16xf32>
    %33 = math.absf %31 : vector<1x16xf32>
    %34 = arith.addf %32, %33 : vector<1x16xf32>
    %35 = vector.shape_cast %34 : vector<1x16xf32> to vector<1x1x16xf32>
    %cst_20 = arith.constant dense<0.000000e+00> : vector<1xf32>
    %36 = vector.multi_reduction <add>, %35, %cst_20 [1, 2] : vector<1x1x16xf32> to vector<1xf32>
    %37 = vector.shape_cast %36 : vector<1xf32> to vector<1x1x1xf32>
    %38 = vector.extract %37[0, 0, 0] : f32 from vector<1x1x1xf32>
    %39 = vector.broadcast %38 : f32 to vector<1x1xf32>
    %40 = arith.addf %27, %39 : vector<1x1xf32>
    %c0_21 = arith.constant 0 : index
    %c0_22 = arith.constant 0 : index
    %41 = vector.load %arg3[%c0_21, %c0_22] : memref<1x128xf32, #tpu.memory_space<vmem>>, vector<1x128xf32>
    %c0_23 = arith.constant 0 : index
    %c0_24 = arith.constant 0 : index
    %42 = vector.load %arg8[%c0_23, %c0_24] : memref<1x128xf32, #tpu.memory_space<vmem>>, vector<1x128xf32>
    %c0_25 = arith.constant 0 : index
    %c0_26 = arith.constant 0 : index
    %43 = vector.load %arg13[%c0_25, %c0_26] : memref<1x128xf32, #tpu.memory_space<vmem>>, vector<1x128xf32>
    %44 = arith.subf %42, %43 : vector<1x128xf32>
    %45 = arith.mulf %41, %44 : vector<1x128xf32>
    %46 = math.absf %44 : vector<1x128xf32>
    %47 = arith.addf %45, %46 : vector<1x128xf32>
    %48 = vector.shape_cast %47 : vector<1x128xf32> to vector<1x1x128xf32>
    %cst_27 = arith.constant dense<0.000000e+00> : vector<1xf32>
    %49 = vector.multi_reduction <add>, %48, %cst_27 [1, 2] : vector<1x1x128xf32> to vector<1xf32>
    %50 = vector.shape_cast %49 : vector<1xf32> to vector<1x1x1xf32>
    %51 = vector.extract %50[0, 0, 0] : f32 from vector<1x1x1xf32>
    %52 = vector.broadcast %51 : f32 to vector<1x1xf32>
    %53 = arith.addf %40, %52 : vector<1x1xf32>
    %c0_28 = arith.constant 0 : index
    %c0_29 = arith.constant 0 : index
    %54 = vector.load %arg4[%c0_28, %c0_29] : memref<1x128xf32, #tpu.memory_space<vmem>>, vector<1x128xf32>
    %c0_30 = arith.constant 0 : index
    %c0_31 = arith.constant 0 : index
    %55 = vector.load %arg9[%c0_30, %c0_31] : memref<1x128xf32, #tpu.memory_space<vmem>>, vector<1x128xf32>
    %c0_32 = arith.constant 0 : index
    %c0_33 = arith.constant 0 : index
    %56 = vector.load %arg14[%c0_32, %c0_33] : memref<1x128xf32, #tpu.memory_space<vmem>>, vector<1x128xf32>
    %57 = arith.subf %55, %56 : vector<1x128xf32>
    %58 = arith.mulf %54, %57 : vector<1x128xf32>
    %59 = math.absf %57 : vector<1x128xf32>
    %60 = arith.addf %58, %59 : vector<1x128xf32>
    %61 = vector.shape_cast %60 : vector<1x128xf32> to vector<1x1x128xf32>
    %cst_34 = arith.constant dense<0.000000e+00> : vector<1xf32>
    %62 = vector.multi_reduction <add>, %61, %cst_34 [1, 2] : vector<1x1x128xf32> to vector<1xf32>
    %63 = vector.shape_cast %62 : vector<1xf32> to vector<1x1x1xf32>
    %64 = vector.extract %63[0, 0, 0] : f32 from vector<1x1x1xf32>
    %65 = vector.broadcast %64 : f32 to vector<1x1xf32>
    %66 = arith.addf %53, %65 : vector<1x1xf32>
    %67 = vector.shape_cast %0 : vector<8x128xf32> to vector<1x8x128xf32>
    %cst_35 = arith.constant dense<0.000000e+00> : vector<1xf32>
    %68 = vector.multi_reduction <add>, %67, %cst_35 [1, 2] : vector<1x8x128xf32> to vector<1xf32>
    %69 = vector.shape_cast %68 : vector<1xf32> to vector<1x1x1xf32>
    %70 = vector.extract %69[0, 0, 0] : f32 from vector<1x1x1xf32>
    %71 = vector.broadcast %70 : f32 to vector<1x1xf32>
    %72 = arith.addf %66, %71 : vector<1x1xf32>
    %c0_36 = arith.constant 0 : index
    %c0_37 = arith.constant 0 : index
    %73 = vector.load %arg15[%c0_36, %c0_37] : memref<1x1xf32, #tpu.memory_space<vmem>>, vector<1x1xf32>
    tpu.vector_store %arg15[%c0_36, %c0_37], %72 {strides = array<i32>} : memref<1x1xf32, #tpu.memory_space<vmem>>, vector<1x1xf32>,
    return
  }
}

</mosaic_0001>

<llo_original>
// kernel: distance_loss.1
$region0: #{distance_loss.1}
  #allocation0 [shape = 'u32[]', space=smem, size = 0x4, offset = 0x4, fixed_abs, tag = 'smem constant byte address 0x4 - core index']
  #allocation1 [shape = 'u32[144,128]{1,0:T(1,128)}', space=vmem, size = 0x12000, scoped, tag = 'internal scratch']
  %s0 = inlined_call_operand.vmem [shape: f32[1,128], index: 0, kind: input, shape index: {}]
  %s1 = inlined_call_operand.vmem [shape: f32[1,16], index: 1, kind: input, shape index: {}]
  %s2 = inlined_call_operand.vmem [shape: f32[1,16], index: 2, kind: input, shape index: {}]
  %s3 = inlined_call_operand.vmem [shape: f32[1,128], index: 3, kind: input, shape index: {}]
  %s4 = inlined_call_operand.vmem [shape: f32[1,128], index: 4, kind: input, shape index: {}]
  %s5 = inlined_call_operand.vmem [shape: f32[1,128], index: 5, kind: input, shape index: {}]
  %s6 = inlined_call_operand.vmem [shape: f32[1,16], index: 6, kind: input, shape index: {}]
  %s7 = inlined_call_operand.vmem [shape: f32[1,16], index: 7, kind: input, shape index: {}]
  %s8 = inlined_call_operand.vmem [shape: f32[1,128], index: 8, kind: input, shape index: {}]
  %s9 = inlined_call_operand.vmem [shape: f32[1,128], index: 9, kind: input, shape index: {}]
  %s10 = inlined_call_operand.vmem [shape: f32[1,128], index: 10, kind: input, shape index: {}]
  %s11 = inlined_call_operand.vmem [shape: f32[1,16], index: 11, kind: input, shape index: {}]
  %s12 = inlined_call_operand.vmem [shape: f32[1,16], index: 12, kind: input, shape index: {}]
  %s13 = inlined_call_operand.vmem [shape: f32[1,128], index: 13, kind: input, shape index: {}]
  %s14 = inlined_call_operand.vmem [shape: f32[1,128], index: 14, kind: input, shape index: {}]
  %s15 = inlined_call_operand.hbm [shape: f32[1,1], index: 15, kind: output, shape index: {}]
  %s16 = sld [smem:[#allocation0]]
  $region70: #{distance_loss.1} parent=0
    _
  %s18 = ssub.s32 1, %s16
  %s19 = scalar_select 0, %s18, %s16
  $region1: #{distance_loss.1} parent=0
    #allocation2 [shape = 'u8[512]{0}', space=vmem, size = 0x400, scoped, tag = 'output window, operand 0, single buffered']
    #allocation3 [shape = 's32[1]{0}', space=sflag, size = 0x4, scoped, tag = 'scoped memory for distance_loss.1']
    %20 = vsyncpa [#allocation3], 0
    // Predicated region
    $region2: #{distance_loss.1} parent=1 // pred_check
      _
    $region3: #{distance_loss.1} parent=1 // pred_check_branch
      %22 = sbr.rel (0) target = $region5
    $region4: #{distance_loss.1} parent=1 // pred_region
      _
    $region5: #{distance_loss.1} parent=1 // pred_fallthru
      _
    // Predicated region
    $region6: #{distance_loss.1} parent=1 // pred_check
      _
    $region7: #{distance_loss.1} parent=1 // pred_check_branch
      %24 = sbr.rel (0) target = $region9
    $region8: #{distance_loss.1} parent=1 // pred_region
      _
    $region9: #{distance_loss.1} parent=1 // pred_fallthru
      _
    // Predicated region
    $region10: #{distance_loss.1} parent=1 // pred_check
      _
    $region11: #{distance_loss.1} parent=1 // pred_check_branch
      %26 = sbr.rel (0) target = $region13
    $region12: #{distance_loss.1} parent=1 // pred_region
      _
    $region13: #{distance_loss.1} parent=1 // pred_fallthru
      _
    // Predicated region
    $region14: #{distance_loss.1} parent=1 // pred_check
      _
    $region15: #{distance_loss.1} parent=1 // pred_check_branch
      %28 = sbr.rel (0) target = $region17
    $region16: #{distance_loss.1} parent=1 // pred_region
      _
    $region17: #{distance_loss.1} parent=1 // pred_fallthru
      _
    // Predicated region
    $region18: #{distance_loss.1} parent=1 // pred_check
      _
    $region19: #{distance_loss.1} parent=1 // pred_check_branch
      %30 = sbr.rel (0) target = $region21
    $region20: #{distance_loss.1} parent=1 // pred_region
      _
    $region21: #{distance_loss.1} parent=1 // pred_fallthru
      _
    // Predicated region
    $region22: #{distance_loss.1} parent=1 // pred_check
      _
    $region23: #{distance_loss.1} parent=1 // pred_check_branch
      %32 = sbr.rel (0) target = $region25
    $region24: #{distance_loss.1} parent=1 // pred_region
      _
    $region25: #{distance_loss.1} parent=1 // pred_fallthru
      _
    // Predicated region
    $region26: #{distance_loss.1} parent=1 // pred_check
      _
    $region27: #{distance_loss.1} parent=1 // pred_check_branch
      %34 = sbr.rel (0) target = $region29
    $region28: #{distance_loss.1} parent=1 // pred_region
      _
    $region29: #{distance_loss.1} parent=1 // pred_fallthru
      _
    // Predicated region
    $region30: #{distance_loss.1} parent=1 // pred_check
      _
    $region31: #{distance_loss.1} parent=1 // pred_check_branch
      %36 = sbr.rel (0) target = $region33
    $region32: #{distance_loss.1} parent=1 // pred_region
      _
    $region33: #{distance_loss.1} parent=1 // pred_fallthru
      _
    // Predicated region
    $region34: #{distance_loss.1} parent=1 // pred_check
      _
    $region35: #{distance_loss.1} parent=1 // pred_check_branch
      %38 = sbr.rel (0) target = $region37
    $region36: #{distance_loss.1} parent=1 // pred_region
      _
    $region37: #{distance_loss.1} parent=1 // pred_fallthru
      _
    // Predicated region
    $region38: #{distance_loss.1} parent=1 // pred_check
      _
    $region39: #{distance_loss.1} parent=1 // pred_check_branch
      %40 = sbr.rel (0) target = $region41
    $region40: #{distance_loss.1} parent=1 // pred_region
      _
    $region41: #{distance_loss.1} parent=1 // pred_fallthru
      _
    // Predicated region
    $region42: #{distance_loss.1} parent=1 // pred_check
      _
    $region43: #{distance_loss.1} parent=1 // pred_check_branch
      %42 = sbr.rel (0) target = $region45
    $region44: #{distance_loss.1} parent=1 // pred_region
      _
    $region45: #{distance_loss.1} parent=1 // pred_fallthru
      _
    // Predicated region
    $region46: #{distance_loss.1} parent=1 // pred_check
      _
    $region47: #{distance_loss.1} parent=1 // pred_check_branch
      %44 = sbr.rel (0) target = $region49
    $region48: #{distance_loss.1} parent=1 // pred_region
      _
    $region49: #{distance_loss.1} parent=1 // pred_fallthru
      _
    // Predicated region
    $region50: #{distance_loss.1} parent=1 // pred_check
      _
    $region51: #{distance_loss.1} parent=1 // pred_check_branch
      %46 = sbr.rel (0) target = $region53
    $region52: #{distance_loss.1} parent=1 // pred_region
      _
    $region53: #{distance_loss.1} parent=1 // pred_fallthru
      _
    // Predicated region
    $region54: #{distance_loss.1} parent=1 // pred_check
      _
    $region55: #{distance_loss.1} parent=1 // pred_check_branch
      %48 = sbr.rel (0) target = $region57
    $region56: #{distance_loss.1} parent=1 // pred_region
      _
    $region57: #{distance_loss.1} parent=1 // pred_fallthru
      _
    // Predicated region
    $region58: #{distance_loss.1} parent=1 // pred_check
      _
    $region59: #{distance_loss.1} parent=1 // pred_check_branch
      %50 = sbr.rel (0) target = $region61
    $region60: #{distance_loss.1} parent=1 // pred_region
      _
    $region61: #{distance_loss.1} parent=1 // pred_fallthru
      _
    %v51 = vld [vmem:[%s0] sm:$0x1]
    %v52 = vld [vmem:[%s5] sm:$0x1]
    %v53 = vld [vmem:[%s10] sm:$0x1]
    %v54 = vsub.f32 %v52, %v53
    %v55 = vmul.f32 %v51, %v54
    %v56 = vand.u32 2147483647, %v54
    %v57 = vadd.f32 %v55, %v56
    %vm58 = vcmask 1040384
    %v59 = vsel %vm58, %v57, 0.0
    %60 = vadd.xlane.f32.xlu0 %v59
    %v61 = vpop.xlane.xlu0 %60
    %v62 = vrot.slane %v61, 4
    %v63 = vadd.f32 %v61, %v62
    %v64 = vrot.slane %v63, 2
    %v65 = vadd.f32 %v63, %v64
    %v66 = vrot.slane %v65, 1
    %v67 = vadd.f32 %v65, %v66
    %s68 = vtos %v67
    %v69 = vstv %s68
    %v70 = vadd.f32 %v69, 0.0
    %v71 = vld [vmem:[%s1] sm:$0x1]
    %v72 = vld [vmem:[%s6] sm:$0x1]
    %v73 = vld [vmem:[%s11] sm:$0x1]
    %v74 = vsub.f32 %v72, %v73
    %v75 = vmul.f32 %v71, %v74
    %v76 = vand.u32 2147483647, %v74
    %v77 = vadd.f32 %v75, %v76
    %vm78 = vcmask 122880
    %v79 = vsel %vm78, %v77, 0.0
    %80 = vadd.xlane.f32.xlu0 %v79
    %v81 = vpop.xlane.xlu0 %80
    %v82 = vrot.slane %v81, 4
    %v83 = vadd.f32 %v81, %v82
    %v84 = vrot.slane %v83, 2
    %v85 = vadd.f32 %v83, %v84
    %v86 = vrot.slane %v85, 1
    %v87 = vadd.f32 %v85, %v86
    %s88 = vtos %v87
    %v89 = vstv %s88
    %v90 = vadd.f32 %v70, %v89
    %v91 = vld [vmem:[%s2] sm:$0x1]
    %v92 = vld [vmem:[%s7] sm:$0x1]
    %v93 = vld [vmem:[%s12] sm:$0x1]
    %v94 = vsub.f32 %v92, %v93
    %v95 = vmul.f32 %v91, %v94
    %v96 = vand.u32 2147483647, %v94
    %v97 = vadd.f32 %v95, %v96
    %v98 = vsel %vm78, %v97, 0.0
    %99 = vadd.xlane.f32.xlu0 %v98
    %v100 = vpop.xlane.xlu0 %99
    %v101 = vrot.slane %v100, 4
    %v102 = vadd.f32 %v100, %v101
    %v103 = vrot.slane %v102, 2
    %v104 = vadd.f32 %v102, %v103
    %v105 = vrot.slane %v104, 1
    %v106 = vadd.f32 %v104, %v105
    %s107 = vtos %v106
    %v108 = vstv %s107
    %v109 = vadd.f32 %v90, %v108
    %v110 = vld [vmem:[%s3] sm:$0x1]
    %v111 = vld [vmem:[%s8] sm:$0x1]
    %v112 = vld [vmem:[%s13] sm:$0x1]
    %v113 = vsub.f32 %v111, %v112
    %v114 = vmul.f32 %v110, %v113
    %v115 = vand.u32 2147483647, %v113
    %v116 = vadd.f32 %v114, %v115
    %v117 = vsel %vm58, %v116, 0.0
    %118 = vadd.xlane.f32.xlu0 %v117
    %v119 = vpop.xlane.xlu0 %118
    %v120 = vrot.slane %v119, 4
    %v121 = vadd.f32 %v119, %v120
    %v122 = vrot.slane %v121, 2
    %v123 = vadd.f32 %v121, %v122
    %v124 = vrot.slane %v123, 1
    %v125 = vadd.f32 %v123, %v124
    %s126 = vtos %v125
    %v127 = vstv %s126
    %v128 = vadd.f32 %v109, %v127
    %v129 = vld [vmem:[%s4] sm:$0x1]
    %v130 = vld [vmem:[%s9] sm:$0x1]
    %v131 = vld [vmem:[%s14] sm:$0x1]
    %v132 = vsub.f32 %v130, %v131
    %v133 = vmul.f32 %v129, %v132
    %v134 = vand.u32 2147483647, %v132
    %v135 = vadd.f32 %v133, %v134
    %v136 = vsel %vm58, %v135, 0.0
    %137 = vadd.xlane.f32.xlu0 %v136
    %v138 = vpop.xlane.xlu0 %137
    %v139 = vrot.slane %v138, 4
    %v140 = vadd.f32 %v138, %v139
    %v141 = vrot.slane %v140, 2
    %v142 = vadd.f32 %v140, %v141
    %v143 = vrot.slane %v142, 1
    %v144 = vadd.f32 %v142, %v143
    %s145 = vtos %v144
    %v146 = vstv %s145
    %v147 = vadd.f32 %v128, %v146
    %148 = vadd.xlane.f32.xlu0 0.0
    %v149 = vpop.xlane.xlu0 %148
    %v150 = vrot.slane %v149, 4
    %v151 = vadd.f32 %v149, %v150
    %v152 = vrot.slane %v151, 2
    %v153 = vadd.f32 %v151, %v152
    %v154 = vrot.slane %v153, 1
    %v155 = vadd.f32 %v153, %v154
    %s156 = vtos %v155
    %v157 = vstv %s156
    %v158 = vadd.f32 %v147, %v157
    %vm159 = vcmask 0
    %160 = vst.msk [vmem:[#allocation2] sm:$0x1] %vm159, %v158
    // Predicated region
    $region62: #{distance_loss.1} parent=1 // pred_check
      _
    $region63: #{distance_loss.1} parent=1 // pred_check_branch
      %162 = sbr.rel (0) target = $region65
    $region64: #{distance_loss.1} parent=1 // pred_region
      %s164 = ssub.s32 16, 16
      %165 = vsyncadd [#allocation3], %s164
      %s167 = sshll.u32 [#allocation2], 4
      %s168 = int_to_ptr.vmem [resolvable:$true] %s167
      %170 = dma.vmem_to_hbm [thread:$0]  %s168, 16, %s15, [#allocation3]
    $region65: #{distance_loss.1} parent=1 // pred_fallthru
      _
    // Predicated region
    $region66: #{distance_loss.1} parent=1 // pred_check
      _
    $region67: #{distance_loss.1} parent=1 // pred_check_branch
      %172 = sbr.rel (0) target = $region69
    $region68: #{distance_loss.1} parent=1 // pred_region
      %173 = dma.done [#allocation3], 16
    $region69: #{distance_loss.1} parent=1 // pred_fallthru
      _
    %174 = vsyncpa [#allocation3], 1

</llo_original>
